<compile_context>
chip_gen: v7x
topology: tpu7x:2x2x1
jax: 0.10.0
libtpu: 0.0.40
codegen_flags: <defaults>
</compile_context>

<pallas_src>
import functools

import jax
import jax.numpy as jnp
import numpy as np
from jax import lax
from jax.experimental import pallas as pl
from jax.experimental.pallas import tpu as pltpu

N_CLASSES = 12
_LANE = 128
# (1, 12->16, 32768) f32 logits block ~= 2 MiB; double-buffered logits + labels
# stay well under the scoped-VMEM default on every TPU generation while each
# grid step moves ~1.5-2 MB (per-step overhead amortized).
_MAX_TILE_S = 32768


def _miou_sums_kernel(x_ref, t_ref, inter_ref, psum_ref, ohsum_ref,
                      acc_i, acc_p, acc_o, *, approx_recip, has_pad):
    # grid = (spatial_splits, N, S_blocks); last axis is the reduction ("arbitrary")
    k = pl.program_id(2)

    @pl.when(k == 0)
    def _():
        acc_i[...] = jnp.zeros_like(acc_i)
        acc_p[...] = jnp.zeros_like(acc_p)
        acc_o[...] = jnp.zeros_like(acc_o)

    x = x_ref[0].astype(jnp.float32)   # (C, tile_s): classes on sublanes, spatial on lanes
    t = t_ref[0]                       # (1, tile_s): int32 labels (-1 marks padding)

    # softmax over the class (sublane) axis
    m = jnp.max(x, axis=0, keepdims=True)               # (1, tile_s)
    e = jnp.exp(x - m)                                   # (C, tile_s)  (EUP)
    denom = jnp.sum(e, axis=0, keepdims=True)            # (1, tile_s)
    p = e * pl.reciprocal(denom, approx=approx_recip)    # (C, tile_s)

    # One-hot via a single iota compare; reuse the mask for both inter and the
    # one-hot count instead of materializing one_hot and multiplying
    # (drops a full-slab int->f32 convert + multiply per step).
    c, ts = x.shape
    class_ids = lax.broadcasted_iota(jnp.int32, (c, ts), 0)
    mask = t == class_ids                                 # (C, tile_s) bool
    inter = jnp.where(mask, p, 0.0)
    oh = jnp.where(mask, 1.0, 0.0)
    if has_pad:
        # Padded columns carry label -1, so mask/oh/inter are already zero
        # there; softmax of the padded logits would still leak into p_sum.
        p = jnp.where(t >= 0, p, 0.0)

    # Accumulate into sublane-layout (C, 1) scratch: the per-step adds are tiny
    # and there is no sublane->lane relayout or masked RMW store of a
    # 12-lane-wide output block on every step.
    acc_i[...] += jnp.sum(inter, axis=-1, keepdims=True)
    acc_p[...] += jnp.sum(p, axis=-1, keepdims=True)
    acc_o[...] += jnp.sum(oh, axis=-1, keepdims=True)

    @pl.when(k == pl.num_programs(2) - 1)
    def _():
        # Single store per (split, n): output block is (1, C, 1) -- classes on
        # sublanes, lane width 1 -> no transpose, no masked partial store.
        inter_ref[0] = acc_i[...]
        psum_ref[0] = acc_p[...]
        ohsum_ref[0] = acc_o[...]


def _pick_tile_s(s_per):
    """Largest multiple-of-128 divisor of s_per (s_per is 128-divisible), capped."""
    t = min(_MAX_TILE_S, s_per)
    t -= t % _LANE
    while s_per % t:
        t -= _LANE
    return t


def miou_loss(inputs_nchw, target_nhw, *, n_classes=N_CLASSES, tile_s=None,
              spatial_splits=None, approx_recip=True):
    """inputs_nchw: (N, C, H, W) float (f32 or bf16); target_nhw: (N, H, W) int.

    approx_recip=True uses the EUP reciprocal for the softmax denominator
    (~1e-3 deviation vs the PyTorch reference); pass False for exact parity.
    """
    n, c, h, w = inputs_nchw.shape
    assert c == n_classes
    s = h * w

    # Free reshape: NCHW -> (N, C, S) (no HBM transpose pass). Pad the spatial
    # axis to a lane multiple so every block shape is (8,128)-legal; padded
    # label columns are -1 (match no class) and masked out of p_sum in-kernel.
    x = inputs_nchw.reshape(n, c, s)
    t = target_nhw.reshape(n, 1, s).astype(jnp.int32)
    s_pad = ((s + _LANE - 1) // _LANE) * _LANE
    has_pad = s_pad != s
    if has_pad:
        x = jnp.pad(x, ((0, 0), (0, 0), (0, s_pad - s)))
        t = jnp.pad(t, ((0, 0), (0, 0), (0, s_pad - s)), constant_values=-1)

    # Megacore: when N is odd (including N == 1) split the spatial axis into two
    # parallel partial sums so both v7x TensorCores get even work (summed in the
    # epilogue; no-op on single-TC v5e/v6e).  Gated on 128-aligned split extent.
    if spatial_splits is None:
        spatial_splits = 2 if (n % 2 == 1 and s_pad % (2 * _LANE) == 0) else 1
    assert s_pad % (spatial_splits * _LANE) == 0
    s_per = s_pad // spatial_splits
    if tile_s is None:
        tile_s = _pick_tile_s(s_per)
    assert tile_s % _LANE == 0 and s_per % tile_s == 0, \
        "tile_s must be a 128-multiple dividing the per-split spatial size"
    kb = s_per // tile_s  # spatial blocks per split

    out_struct = jax.ShapeDtypeStruct((spatial_splits * n, c, 1), jnp.float32)

    def in_map(p_, i, k):
        return (i, 0, p_ * kb + k)

    def out_map(p_, i, k):
        return (p_ * n + i, 0, 0)

    # Explicit VMEM guard for the larger tiles (v7x: 64 MiB physical / 32 MiB
    # scoped default): double-buffered logits + label blocks with headroom.
    x_bytes = jnp.dtype(x.dtype).itemsize
    sub_rows = 8 * (4 // x_bytes)                       # sublane packing (f32: 8, bf16: 16)
    logits_blk = ((c + sub_rows - 1) // sub_rows) * sub_rows * tile_s * x_bytes
    label_blk = 8 * tile_s * 4                          # 1 sublane row padded to 8
    vmem_limit = int(4 * (logits_blk + label_blk) + (8 << 20))

    inter, p_sum, oh_sum = pl.pallas_call(
        functools.partial(_miou_sums_kernel, approx_recip=approx_recip,
                          has_pad=has_pad),
        out_shape=(out_struct, out_struct, out_struct),
        grid_spec=pltpu.PrefetchScalarGridSpec(
            num_scalar_prefetch=0,
            grid=(spatial_splits, n, kb),
            in_specs=[
                pl.BlockSpec((1, c, tile_s), in_map),   # logits block, classes on sublanes
                pl.BlockSpec((1, 1, tile_s), in_map),   # labels block
            ],
            out_specs=[
                pl.BlockSpec((1, c, 1), out_map),
                pl.BlockSpec((1, c, 1), out_map),
                pl.BlockSpec((1, c, 1), out_map),
            ],
            scratch_shapes=[pltpu.VMEM((c, 1), jnp.float32)] * 3,
        ),
        compiler_params=pltpu.CompilerParams(
            dimension_semantics=("parallel", "parallel", "arbitrary"),
            vmem_limit_bytes=vmem_limit,
        ),
    )(x, t)

    inter = inter.reshape(spatial_splits, n, c).sum(axis=0)
    p_sum = p_sum.reshape(spatial_splits, n, c).sum(axis=0)
    oh_sum = oh_sum.reshape(spatial_splits, n, c).sum(axis=0)
    union = p_sum + oh_sum - inter
    return 1.0 - jnp.mean(inter / union)


def _miou_loss_ref(inputs_nchw, target_nhw, n_classes=N_CLASSES):
    # pure-JAX reference mirroring the PyTorch module
    n = inputs_nchw.shape[0]
    p = jax.nn.softmax(inputs_nchw.astype(jnp.float32), axis=1)
    oh = jax.nn.one_hot(target_nhw, n_classes, axis=1, dtype=jnp.float32)
    inter = (p * oh).reshape(n, n_classes, -1).sum(2)
    union = (p + oh - p * oh).reshape(n, n_classes, -1).sum(2)
    return 1.0 - jnp.mean(inter / union)


if __name__ == "__main__":
    key = jax.random.PRNGKey(0)

    def check(n, h, w, *, dtype=jnp.float32, approx=True, tol=1e-3):
        k1, k2 = jax.random.split(jax.random.fold_in(key, n * 100003 + h * 131 + w))
        logits = jax.random.normal(k1, (n, N_CLASSES, h, w), dtype=jnp.float32)
        target = jax.random.randint(k2, (n, h, w), 0, N_CLASSES, dtype=jnp.int32)
        ref = _miou_loss_ref(logits, target)
        out = miou_loss(logits.astype(dtype), target, approx_recip=approx)
        jax.block_until_ready(out)
        assert np.allclose(np.asarray(out), np.asarray(ref), rtol=tol, atol=tol), (
            (n, h, w, str(dtype), approx), float(out), float(ref))

    # Main case: exact-reciprocal, fast EUP-reciprocal, and bf16-ingest paths.
    check(2, 16, 16, approx=False, tol=1e-5)
    check(2, 16, 16, approx=True, tol=1e-3)
    check(2, 16, 16, dtype=jnp.bfloat16, tol=2e-2)
    # N == 1: exercises the spatial split that feeds both v7x TensorCores.
    check(1, 32, 32, tol=1e-3)
    # Non-128-divisible spatial size: exercises the padded + masked path.
    check(2, 10, 10, tol=1e-3)

    print("KERNEL_OK")
</pallas_src>

<mosaic_0001>
module attributes {stable_mosaic.version = 11 : i64} {
  func.func @_miou_sums_kernel(%arg0: i32, %arg1: i32, %arg2: i32, %arg3: memref<1x12x256xf32, #tpu.memory_space<vmem>>, %arg4: memref<1x1x256xi32, #tpu.memory_space<vmem>>, %arg5: memref<1x12x1xf32, #tpu.memory_space<vmem>>, %arg6: memref<1x12x1xf32, #tpu.memory_space<vmem>>, %arg7: memref<1x12x1xf32, #tpu.memory_space<vmem>>, %arg8: memref<12x1xf32, #tpu.memory_space<vmem>>, %arg9: memref<12x1xf32, #tpu.memory_space<vmem>>, %arg10: memref<12x1xf32, #tpu.memory_space<vmem>>) attributes {dimension_semantics = [#tpu.dimension_semantics<parallel>, #tpu.dimension_semantics<parallel>, #tpu.dimension_semantics<arbitrary>], iteration_bounds = array<i64: 1, 2, 1>, scalar_prefetch = 0 : i64, scratch_operands = 3 : i64, tpu.core_type = #tpu.core_type<tc>, window_params = [{transform_indices = @transform_0, window_bounds = array<i64: 1, 12, 256>}, {transform_indices = @transform_1, window_bounds = array<i64: 1, 1, 256>}, {transform_indices = @transform_2, window_bounds = array<i64: 1, 12, 1>}, {transform_indices = @transform_3, window_bounds = array<i64: 1, 12, 1>}, {transform_indices = @transform_4, window_bounds = array<i64: 1, 12, 1>}]} {
    %c0_i32 = arith.constant 0 : i32
    %0 = arith.cmpi eq, %arg2, %c0_i32 : i32
    %1 = arith.extui %0 : i1 to i32
    %c0_i32_0 = arith.constant 0 : i32
    %2 = arith.cmpi ne, %1, %c0_i32_0 : i32
    scf.if %2 {
      %cst_27 = arith.constant 0.000000e+00 : f32
      %43 = vector.broadcast %cst_27 : f32 to vector<12x1xf32>
      %c0_28 = arith.constant 0 : index
      %c0_29 = arith.constant 0 : index
      %44 = vector.load %arg8[%c0_28, %c0_29] : memref<12x1xf32, #tpu.memory_space<vmem>>, vector<12x1xf32>
      tpu.vector_store %arg8[%c0_28, %c0_29], %43 {strides = array<i32>} : memref<12x1xf32, #tpu.memory_space<vmem>>, vector<12x1xf32>,
      %cst_30 = arith.constant 0.000000e+00 : f32
      %45 = vector.broadcast %cst_30 : f32 to vector<12x1xf32>
      %c0_31 = arith.constant 0 : index
      %c0_32 = arith.constant 0 : index
      %46 = vector.load %arg9[%c0_31, %c0_32] : memref<12x1xf32, #tpu.memory_space<vmem>>, vector<12x1xf32>
      tpu.vector_store %arg9[%c0_31, %c0_32], %45 {strides = array<i32>} : memref<12x1xf32, #tpu.memory_space<vmem>>, vector<12x1xf32>,
      %cst_33 = arith.constant 0.000000e+00 : f32
      %47 = vector.broadcast %cst_33 : f32 to vector<12x1xf32>
      %c0_34 = arith.constant 0 : index
      %c0_35 = arith.constant 0 : index
      %48 = vector.load %arg10[%c0_34, %c0_35] : memref<12x1xf32, #tpu.memory_space<vmem>>, vector<12x1xf32>
      tpu.vector_store %arg10[%c0_34, %c0_35], %47 {strides = array<i32>} : memref<12x1xf32, #tpu.memory_space<vmem>>, vector<12x1xf32>,
    } else {
    }
    %c0 = arith.constant 0 : index
    %c0_1 = arith.constant 0 : index
    %c0_2 = arith.constant 0 : index
    %3 = vector.load %arg3[%c0, %c0_1, %c0_2] : memref<1x12x256xf32, #tpu.memory_space<vmem>>, vector<1x12x256xf32>
    %4 = vector.shape_cast %3 : vector<1x12x256xf32> to vector<12x256xf32>
    %c0_3 = arith.constant 0 : index
    %c0_4 = arith.constant 0 : index
    %c0_5 = arith.constant 0 : index
    %5 = vector.load %arg4[%c0_3, %c0_4, %c0_5] : memref<1x1x256xi32, #tpu.memory_space<vmem>>, vector<1x1x256xi32>
    %6 = vector.shape_cast %5 : vector<1x1x256xi32> to vector<1x256xi32>
    %cst = arith.constant dense<0xFF800000> : vector<256xf32>
    %7 = vector.multi_reduction <maximumf>, %4, %cst [0] : vector<12x256xf32> to vector<256xf32>
    %8 = vector.shape_cast %7 : vector<256xf32> to vector<1x256xf32>
    %9 = vector.broadcast %8 : vector<1x256xf32> to vector<12x256xf32>
    %10 = arith.subf %4, %9 : vector<12x256xf32>
    %11 = math.exp %10 : vector<12x256xf32>
    %cst_6 = arith.constant dense<0.000000e+00> : vector<256xf32>
    %12 = vector.multi_reduction <add>, %11, %cst_6 [0] : vector<12x256xf32> to vector<256xf32>
    %13 = vector.shape_cast %12 : vector<256xf32> to vector<1x256xf32>
    %14 = tpu.reciprocal %13 : vector<1x256xf32> -> vector<1x256xf32>
    %15 = vector.broadcast %14 : vector<1x256xf32> to vector<12x256xf32>
    %16 = arith.mulf %11, %15 : vector<12x256xf32>
    %17 = tpu.iota {dimensions = array<i32: 0>} : vector<12x256xi32>
    %18 = vector.broadcast %6 : vector<1x256xi32> to vector<12x256xi32>
    %19 = arith.cmpi eq, %18, %17 : vector<12x256xi32>
    %cst_7 = arith.constant 0.000000e+00 : f32
    %20 = vector.broadcast %cst_7 : f32 to vector<12x256xf32>
    %21 = arith.select %19, %16, %20 : vector<12x256xi1>, vector<12x256xf32>
    %cst_8 = arith.constant 1.000000e+00 : f32
    %cst_9 = arith.constant 0.000000e+00 : f32
    %22 = vector.broadcast %cst_8 : f32 to vector<12x256xf32>
    %23 = vector.broadcast %cst_9 : f32 to vector<12x256xf32>
    %24 = arith.select %19, %22, %23 : vector<12x256xi1>, vector<12x256xf32>
    %c0_10 = arith.constant 0 : index
    %c0_11 = arith.constant 0 : index
    %25 = vector.load %arg8[%c0_10, %c0_11] : memref<12x1xf32, #tpu.memory_space<vmem>>, vector<12x1xf32>
    %cst_12 = arith.constant dense<0.000000e+00> : vector<12xf32>
    %26 = vector.multi_reduction <add>, %21, %cst_12 [1] : vector<12x256xf32> to vector<12xf32>
    %27 = vector.shape_cast %26 : vector<12xf32> to vector<12x1xf32>
    %28 = arith.addf %25, %27 : vector<12x1xf32>
    %c0_13 = arith.constant 0 : index
    %c0_14 = arith.constant 0 : index
    %29 = vector.load %arg8[%c0_13, %c0_14] : memref<12x1xf32, #tpu.memory_space<vmem>>, vector<12x1xf32>
    tpu.vector_store %arg8[%c0_13, %c0_14], %28 {strides = array<i32>} : memref<12x1xf32, #tpu.memory_space<vmem>>, vector<12x1xf32>,
    %c0_15 = arith.constant 0 : index
    %c0_16 = arith.constant 0 : index
    %30 = vector.load %arg9[%c0_15, %c0_16] : memref<12x1xf32, #tpu.memory_space<vmem>>, vector<12x1xf32>
    %cst_17 = arith.constant dense<0.000000e+00> : vector<12xf32>
    %31 = vector.multi_reduction <add>, %16, %cst_17 [1] : vector<12x256xf32> to vector<12xf32>
    %32 = vector.shape_cast %31 : vector<12xf32> to vector<12x1xf32>
    %33 = arith.addf %30, %32 : vector<12x1xf32>
    %c0_18 = arith.constant 0 : index
    %c0_19 = arith.constant 0 : index
    %34 = vector.load %arg9[%c0_18, %c0_19] : memref<12x1xf32, #tpu.memory_space<vmem>>, vector<12x1xf32>
    tpu.vector_store %arg9[%c0_18, %c0_19], %33 {strides = array<i32>} : memref<12x1xf32, #tpu.memory_space<vmem>>, vector<12x1xf32>,
    %c0_20 = arith.constant 0 : index
    %c0_21 = arith.constant 0 : index
    %35 = vector.load %arg10[%c0_20, %c0_21] : memref<12x1xf32, #tpu.memory_space<vmem>>, vector<12x1xf32>
    %cst_22 = arith.constant dense<0.000000e+00> : vector<12xf32>
    %36 = vector.multi_reduction <add>, %24, %cst_22 [1] : vector<12x256xf32> to vector<12xf32>
    %37 = vector.shape_cast %36 : vector<12xf32> to vector<12x1xf32>
    %38 = arith.addf %35, %37 : vector<12x1xf32>
    %c0_23 = arith.constant 0 : index
    %c0_24 = arith.constant 0 : index
    %39 = vector.load %arg10[%c0_23, %c0_24] : memref<12x1xf32, #tpu.memory_space<vmem>>, vector<12x1xf32>
    tpu.vector_store %arg10[%c0_23, %c0_24], %38 {strides = array<i32>} : memref<12x1xf32, #tpu.memory_space<vmem>>, vector<12x1xf32>,
    %c0_i32_25 = arith.constant 0 : i32
    %40 = arith.cmpi eq, %arg2, %c0_i32_25 : i32
    %41 = arith.extui %40 : i1 to i32
    %c0_i32_26 = arith.constant 0 : i32
    %42 = arith.cmpi ne, %41, %c0_i32_26 : i32
    scf.if %42 {
      %c0_27 = arith.constant 0 : index
      %c0_28 = arith.constant 0 : index
      %43 = vector.load %arg8[%c0_27, %c0_28] : memref<12x1xf32, #tpu.memory_space<vmem>>, vector<12x1xf32>
      %c0_29 = arith.constant 0 : index
      %c0_30 = arith.constant 0 : index
      %c0_31 = arith.constant 0 : index
      %44 = vector.load %arg5[%c0_29, %c0_30, %c0_31] : memref<1x12x1xf32, #tpu.memory_space<vmem>>, vector<1x12x1xf32>
      %45 = vector.shape_cast %44 : vector<1x12x1xf32> to vector<12x1xf32>
      %46 = vector.shape_cast %43 : vector<12x1xf32> to vector<1x12x1xf32>
      tpu.vector_store %arg5[%c0_29, %c0_30, %c0_31], %46 {strides = array<i32>} : memref<1x12x1xf32, #tpu.memory_space<vmem>>, vector<1x12x1xf32>,
      %c0_32 = arith.constant 0 : index
      %c0_33 = arith.constant 0 : index
      %47 = vector.load %arg9[%c0_32, %c0_33] : memref<12x1xf32, #tpu.memory_space<vmem>>, vector<12x1xf32>
      %c0_34 = arith.constant 0 : index
      %c0_35 = arith.constant 0 : index
      %c0_36 = arith.constant 0 : index
      %48 = vector.load %arg6[%c0_34, %c0_35, %c0_36] : memref<1x12x1xf32, #tpu.memory_space<vmem>>, vector<1x12x1xf32>
      %49 = vector.shape_cast %48 : vector<1x12x1xf32> to vector<12x1xf32>
      %50 = vector.shape_cast %47 : vector<12x1xf32> to vector<1x12x1xf32>
      tpu.vector_store %arg6[%c0_34, %c0_35, %c0_36], %50 {strides = array<i32>} : memref<1x12x1xf32, #tpu.memory_space<vmem>>, vector<1x12x1xf32>,
      %c0_37 = arith.constant 0 : index
      %c0_38 = arith.constant 0 : index
      %51 = vector.load %arg10[%c0_37, %c0_38] : memref<12x1xf32, #tpu.memory_space<vmem>>, vector<12x1xf32>
      %c0_39 = arith.constant 0 : index
      %c0_40 = arith.constant 0 : index
      %c0_41 = arith.constant 0 : index
      %52 = vector.load %arg7[%c0_39, %c0_40, %c0_41] : memref<1x12x1xf32, #tpu.memory_space<vmem>>, vector<1x12x1xf32>
      %53 = vector.shape_cast %52 : vector<1x12x1xf32> to vector<12x1xf32>
      %54 = vector.shape_cast %51 : vector<12x1xf32> to vector<1x12x1xf32>
      tpu.vector_store %arg7[%c0_39, %c0_40, %c0_41], %54 {strides = array<i32>} : memref<1x12x1xf32, #tpu.memory_space<vmem>>, vector<1x12x1xf32>,
    } else {
    }
    return
  }
  func.func @transform_0(%arg0: i32, %arg1: i32, %arg2: i32) -> (i32, i32, i32) {
    %c1_i32 = arith.constant 1 : i32
    %0 = arith.muli %arg0, %c1_i32 : i32
    %1 = arith.addi %0, %arg2 : i32
    %c0_i32 = arith.constant 0 : i32
    %c0_i32_0 = arith.constant 0 : i32
    return %arg1, %c0_i32, %1 : i32, i32, i32
  }
  func.func @transform_1(%arg0: i32, %arg1: i32, %arg2: i32) -> (i32, i32, i32) {
    %c1_i32 = arith.constant 1 : i32
    %0 = arith.muli %arg0, %c1_i32 : i32
    %1 = arith.addi %0, %arg2 : i32
    %c0_i32 = arith.constant 0 : i32
    %c0_i32_0 = arith.constant 0 : i32
    return %arg1, %c0_i32, %1 : i32, i32, i32
  }
  func.func @transform_2(%arg0: i32, %arg1: i32, %arg2: i32) -> (i32, i32, i32) {
    %c2_i32 = arith.constant 2 : i32
    %0 = arith.muli %arg0, %c2_i32 : i32
    %1 = arith.addi %0, %arg1 : i32
    %c0_i32 = arith.constant 0 : i32
    %c0_i32_0 = arith.constant 0 : i32
    %c0_i32_1 = arith.constant 0 : i32
    return %1, %c0_i32, %c0_i32_0 : i32, i32, i32
  }
  func.func @transform_3(%arg0: i32, %arg1: i32, %arg2: i32) -> (i32, i32, i32) {
    %c2_i32 = arith.constant 2 : i32
    %0 = arith.muli %arg0, %c2_i32 : i32
    %1 = arith.addi %0, %arg1 : i32
    %c0_i32 = arith.constant 0 : i32
    %c0_i32_0 = arith.constant 0 : i32
    %c0_i32_1 = arith.constant 0 : i32
    return %1, %c0_i32, %c0_i32_0 : i32, i32, i32
  }
  func.func @transform_4(%arg0: i32, %arg1: i32, %arg2: i32) -> (i32, i32, i32) {
    %c2_i32 = arith.constant 2 : i32
    %0 = arith.muli %arg0, %c2_i32 : i32
    %1 = arith.addi %0, %arg1 : i32
    %c0_i32 = arith.constant 0 : i32
    %c0_i32_0 = arith.constant 0 : i32
    %c0_i32_1 = arith.constant 0 : i32
    return %1, %c0_i32, %c0_i32_0 : i32, i32, i32
  }
}

</mosaic_0001>

<llo_original>
// kernel: tpu_custom_call.1
$region0: #{tpu_custom_call.1}
  #allocation0 [shape = 'u32[]', space=smem, size = 0x4, offset = 0x4, fixed_abs, tag = 'smem constant byte address 0x4 - core index']
  #allocation1 [shape = 'u32[144,128]{1,0:T(1,128)}', space=vmem, size = 0x12000, scoped, tag = 'internal scratch']
  #allocation2 [shape = 'f32[12,1]{1,0:T(8,128)}', space=vmem, size = 0x2000, scoped, tag = 'scratch operand']
  #allocation3 [shape = 'f32[12,1]{1,0:T(8,128)}', space=vmem, size = 0x2000, scoped, tag = 'scratch operand']
  #allocation4 [shape = 'f32[12,1]{1,0:T(8,128)}', space=vmem, size = 0x2000, scoped, tag = 'scratch operand']
  %s0 = inlined_call_operand.vmem [shape: f32[2,12,256], index: 0, kind: input, shape index: {}]
  %s1 = inlined_call_operand.vmem [shape: s32[2,1,256], index: 1, kind: input, shape index: {}]
  %s2 = inlined_call_operand.vmem [shape: f32[2,12,1], index: 2, kind: output, shape index: {0}]
  %s3 = inlined_call_operand.vmem [shape: f32[2,12,1], index: 3, kind: output, shape index: {1}]
  %s4 = inlined_call_operand.vmem [shape: f32[2,12,1], index: 4, kind: output, shape index: {2}]
  %5 = xla_tuple %s2, %s3, %s4
  %s6 = sld [smem:[#allocation0]]
  $region65: #{tpu_custom_call.1} parent=0
    _
  %s8 = ssub.s32 1, %s6
  %s9 = scalar_select 0, %s8, %s6
  loop: start=0, step=1, limit=4
  $region2: #{tpu_custom_call.1} parent=0 // loop_pre_header
    _
  $region3: #{tpu_custom_call.1} parent=0 // loop_header
    %s11 = sphi 0, %s15
    %p12 = scmp.ge.s32.totalorder %s11, 4
    %s18 = sphi 0, %s37
    %s19 = sphi 0, %s33
    %s20 = sphi 0, %s29
    %s21 = sphi 0, %s18
    %s22 = sphi 0, %s19
    %s23 = sphi 0, %s20
    %s24 = sphi 0, %s21
    %s25 = sphi 0, %s22
    %s26 = sphi 0, %s23
    %s44 = sphi 0, %s46
    %s47 = sphi 0, %s44
    %s48 = sphi 0, %s47
    %s64 = sphi 0, %s48
    %s74 = sphi 0, %s76
    %s77 = sphi 0, %s74
    %s78 = sphi 0, %s77
    %s94 = sphi 0, %s78
    %s104 = sphi 0, %s106
    %s107 = sphi 0, %s104
    %s108 = sphi 0, %s107
    %s124 = sphi 0, %s108
    %s134 = sphi 0, %s136
    %s137 = sphi 0, %s134
    %s138 = sphi 0, %s137
    %s154 = sphi 0, %s138
    %s164 = sphi 0, %s166
    %s167 = sphi 0, %s164
    %s168 = sphi 0, %s167
    %s184 = sphi 0, %s168
  $region4: #{tpu_custom_call.1} parent=0 // loop_header_branch
    %14 = sbr.rel (%p12) target = $region8
  $region5: #{tpu_custom_call.1} parent=0 // loop_body
    %s16 = ssub.s32 %s11, 1
    %s17 = ssub.s32 %s11, 2
    %s27 = sadd.s32 1, %s20
    %p28 = scmp.ge.s32.totalorder %s27, 1
    %s29 = scalar_select %p28, 0, %s27
    %s30 = sadd.s32 1, %s19
    %s31 = scalar_select %p28, %s30, %s19
    %p32 = scmp.ge.s32.totalorder %s31, 2
    %s33 = scalar_select %p32, 0, %s31
    %s34 = sadd.s32 1, %s18
    %s35 = scalar_select %p32, %s34, %s18
    %p36 = scmp.ge.s32.totalorder %s35, 1
    %s37 = scalar_select %p36, 0, %s35
    %s38 = sadd.s32 %s18, %s20
    %s39 = sadd.s32 %s37, %s29
    %s40 = ssub.s32 %s19, %s33
    %s41 = ssub.s32 %s38, %s39
    %s42 = sor.u32 %s40, %s41
    %p43 = scmp.eq.s32.totalorder %s42, 0
    %s45 = sadd.s32 %s44, 1
    %s46 = scalar_select %p43, %s44, %s45
    %p49 = pneg %p43
    %p50 = scmp.eq.s32.totalorder %s11, 1
    %p51 = por %p49, %p50
    %p52 = scmp.ne.s32.totalorder %s44, %s47
    %p53 = scmp.eq.s32.totalorder %s11, 0
    %p54 = por %p52, %p53
    %p55 = scmp.ne.s32.totalorder %s44, %s47
    %p56 = scmp.eq.s32.totalorder %s16, 1
    %p57 = por %p55, %p56
    %p58 = scmp.ne.s32.totalorder %s47, %s48
    %p59 = scmp.eq.s32.totalorder %s16, 0
    %p60 = por %p58, %p59
    %p61 = scmp.ne.s32.totalorder %s47, %s48
    %p62 = scmp.eq.s32.totalorder %s17, 1
    %p63 = por %p61, %p62
    %p65 = scmp.ne.s32.totalorder %s48, %s64
    %p66 = scmp.eq.s32.totalorder %s17, 0
    %p67 = por %p65, %p66
    %s68 = sadd.s32 %s18, %s20
    %s69 = sadd.s32 %s37, %s29
    %s70 = ssub.s32 %s19, %s33
    %s71 = ssub.s32 %s68, %s69
    %s72 = sor.u32 %s70, %s71
    %p73 = scmp.eq.s32.totalorder %s72, 0
    %s75 = sadd.s32 %s74, 1
    %s76 = scalar_select %p73, %s74, %s75
    %p79 = pneg %p73
    %p80 = scmp.eq.s32.totalorder %s11, 1
    %p81 = por %p79, %p80
    %p82 = scmp.ne.s32.totalorder %s74, %s77
    %p83 = scmp.eq.s32.totalorder %s11, 0
    %p84 = por %p82, %p83
    %p85 = scmp.ne.s32.totalorder %s74, %s77
    %p86 = scmp.eq.s32.totalorder %s16, 1
    %p87 = por %p85, %p86
    %p88 = scmp.ne.s32.totalorder %s77, %s78
    %p89 = scmp.eq.s32.totalorder %s16, 0
    %p90 = por %p88, %p89
    %p91 = scmp.ne.s32.totalorder %s77, %s78
    %p92 = scmp.eq.s32.totalorder %s17, 1
    %p93 = por %p91, %p92
    %p95 = scmp.ne.s32.totalorder %s78, %s94
    %p96 = scmp.eq.s32.totalorder %s17, 0
    %p97 = por %p95, %p96
    %s98 = smul.u32 %s18, 2
    %s99 = sadd.s32 %s98, %s19
    %s100 = smul.u32 %s37, 2
    %s101 = sadd.s32 %s100, %s33
    %s102 = ssub.s32 %s99, %s101
    %p103 = scmp.eq.s32.totalorder %s102, 0
    %s105 = sadd.s32 %s104, 1
    %s106 = scalar_select %p103, %s104, %s105
    %p109 = pneg %p103
    %p110 = scmp.eq.s32.totalorder %s11, 1
    %p111 = por %p109, %p110
    %p112 = scmp.ne.s32.totalorder %s104, %s107
    %p113 = scmp.eq.s32.totalorder %s11, 0
    %p114 = por %p112, %p113
    %p115 = scmp.ne.s32.totalorder %s104, %s107
    %p116 = scmp.eq.s32.totalorder %s16, 1
    %p117 = por %p115, %p116
    %p118 = scmp.ne.s32.totalorder %s107, %s108
    %p119 = scmp.eq.s32.totalorder %s16, 0
    %p120 = por %p118, %p119
    %p121 = scmp.ne.s32.totalorder %s107, %s108
    %p122 = scmp.eq.s32.totalorder %s17, 1
    %p123 = por %p121, %p122
    %p125 = scmp.ne.s32.totalorder %s108, %s124
    %p126 = scmp.eq.s32.totalorder %s17, 0
    %p127 = por %p125, %p126
    %s128 = smul.u32 %s18, 2
    %s129 = sadd.s32 %s128, %s19
    %s130 = smul.u32 %s37, 2
    %s131 = sadd.s32 %s130, %s33
    %s132 = ssub.s32 %s129, %s131
    %p133 = scmp.eq.s32.totalorder %s132, 0
    %s135 = sadd.s32 %s134, 1
    %s136 = scalar_select %p133, %s134, %s135
    %p139 = pneg %p133
    %p140 = scmp.eq.s32.totalorder %s11, 1
    %p141 = por %p139, %p140
    %p142 = scmp.ne.s32.totalorder %s134, %s137
    %p143 = scmp.eq.s32.totalorder %s11, 0
    %p144 = por %p142, %p143
    %p145 = scmp.ne.s32.totalorder %s134, %s137
    %p146 = scmp.eq.s32.totalorder %s16, 1
    %p147 = por %p145, %p146
    %p148 = scmp.ne.s32.totalorder %s137, %s138
    %p149 = scmp.eq.s32.totalorder %s16, 0
    %p150 = por %p148, %p149
    %p151 = scmp.ne.s32.totalorder %s137, %s138
    %p152 = scmp.eq.s32.totalorder %s17, 1
    %p153 = por %p151, %p152
    %p155 = scmp.ne.s32.totalorder %s138, %s154
    %p156 = scmp.eq.s32.totalorder %s17, 0
    %p157 = por %p155, %p156
    %s158 = smul.u32 %s18, 2
    %s159 = sadd.s32 %s158, %s19
    %s160 = smul.u32 %s37, 2
    %s161 = sadd.s32 %s160, %s33
    %s162 = ssub.s32 %s159, %s161
    %p163 = scmp.eq.s32.totalorder %s162, 0
    %s165 = sadd.s32 %s164, 1
    %s166 = scalar_select %p163, %s164, %s165
    %p169 = pneg %p163
    %p170 = scmp.eq.s32.totalorder %s11, 1
    %p171 = por %p169, %p170
    %p172 = scmp.ne.s32.totalorder %s164, %s167
    %p173 = scmp.eq.s32.totalorder %s11, 0
    %p174 = por %p172, %p173
    %p175 = scmp.ne.s32.totalorder %s164, %s167
    %p176 = scmp.eq.s32.totalorder %s16, 1
    %p177 = por %p175, %p176
    %p178 = scmp.ne.s32.totalorder %s167, %s168
    %p179 = scmp.eq.s32.totalorder %s16, 0
    %p180 = por %p178, %p179
    %p181 = scmp.ne.s32.totalorder %s167, %s168
    %p182 = scmp.eq.s32.totalorder %s17, 1
    %p183 = por %p181, %p182
    %p185 = scmp.ne.s32.totalorder %s168, %s184
    %p186 = scmp.eq.s32.totalorder %s17, 0
    %p187 = por %p185, %p186
    %p188 = scmp.le.s32.totalorder 1, %s11
    %p189 = scmp.lt.s32.totalorder %s11, 3
    %p190 = pnand %p188, %p189
    %p191 = pneg %p190
    // Predicated region
    $region9: #{tpu_custom_call.1} parent=5 // pred_check
      _
    $region10: #{tpu_custom_call.1} parent=5 // pred_check_branch
      %193 = sbr.rel (%p190) target = $region12
    $region11: #{tpu_custom_call.1} parent=5 // pred_region
      %s194 = ssub.s32 %s11, 1
    $region12: #{tpu_custom_call.1} parent=5 // pred_fallthru
      _
    %p195 = scmp.lt.s32.totalorder %s11, 2
    // Predicated region
    $region13: #{tpu_custom_call.1} parent=5 // pred_check
      %p196 = pneg %p195
    $region14: #{tpu_custom_call.1} parent=5 // pred_check_branch
      %198 = sbr.rel (%p196) target = $region16
    $region15: #{tpu_custom_call.1} parent=5 // pred_region
      // Predicated region
      $region17: #{tpu_custom_call.1} parent=15 // pred_check
        %p199 = pneg %p54
      $region18: #{tpu_custom_call.1} parent=15 // pred_check_branch
        %201 = sbr.rel (%p199) target = $region20
      $region19: #{tpu_custom_call.1} parent=15 // pred_region
        %s202 = sadd.s32 %s18, %s20
        %s203 = smul.u32 2, %s202
        %p204 = scmp.lt.s32.totalorder %s19, 1
        %s205 = scalar_select %p204, %s19, 1
        %p206 = scmp.lt.s32.totalorder %s203, 1
        %s207 = scalar_select %p206, %s203, 1
        %s208 = smul.addr %s205, 4
        %s209 = sadd.s32 %s207, %s208
        %s210 = smul.addr %s209, 8
        %s211 = scalar_lea.vmem %s0, %s210
        %s212 = sadd.s32 %s18, %s20
        %s213 = smul.u32 2, %s212
      $region20: #{tpu_custom_call.1} parent=15 // pred_fallthru
        _
      // Predicated region
      $region21: #{tpu_custom_call.1} parent=15 // pred_check
        %p214 = pneg %p84
      $region22: #{tpu_custom_call.1} parent=15 // pred_check_branch
        %216 = sbr.rel (%p214) target = $region24
      $region23: #{tpu_custom_call.1} parent=15 // pred_region
        %s217 = sadd.s32 %s18, %s20
        %s218 = smul.u32 2, %s217
        %p219 = scmp.lt.s32.totalorder %s19, 1
        %s220 = scalar_select %p219, %s19, 1
        %p221 = scmp.lt.s32.totalorder %s218, 1
        %s222 = scalar_select %p221, %s218, 1
        %s223 = smul.addr %s220, 2
        %s224 = sadd.s32 %s222, %s223
        %s225 = scalar_lea.vmem %s1, %s224
        %s226 = sadd.s32 %s18, %s20
        %s227 = smul.u32 2, %s226
      $region24: #{tpu_custom_call.1} parent=15 // pred_fallthru
        _
    $region16: #{tpu_custom_call.1} parent=5 // pred_fallthru
      _
    %p228 = scmp.le.s32.totalorder 1, %s11
    %p229 = scmp.lt.s32.totalorder %s11, 3
    %p230 = pnand %p228, %p229
    %p231 = pneg %p230
    // Predicated region
    $region25: #{tpu_custom_call.1} parent=5 // pred_check
      _
    $region26: #{tpu_custom_call.1} parent=5 // pred_check_branch
      %233 = sbr.rel (%p230) target = $region28
    $region27: #{tpu_custom_call.1} parent=5 // pred_region
      %s234 = ssub.s32 %s11, 1
      %s235 = sadd.s32 %s21, %s23
      %s236 = smul.u32 2, %s235
      %p237 = scmp.lt.s32.totalorder %s22, 1
      %s238 = scalar_select %p237, %s22, 1
      %p239 = scmp.lt.s32.totalorder %s236, 1
      %s240 = scalar_select %p239, %s236, 1
      %s241 = smul.addr %s238, 4
      %s242 = sadd.s32 %s240, %s241
      %s243 = smul.addr %s242, 8
      %s244 = scalar_lea.vmem %s0, %s243
      %p245 = pneg %p60
      %p246 = pneg %p57
      %s247 = sadd.s32 %s21, %s23
      %s248 = smul.u32 2, %s247
      %p249 = scmp.lt.s32.totalorder %s22, 1
      %s250 = scalar_select %p249, %s22, 1
      %p251 = scmp.lt.s32.totalorder %s248, 1
      %s252 = scalar_select %p251, %s248, 1
      %s253 = smul.addr %s250, 2
      %s254 = sadd.s32 %s252, %s253
      %s255 = scalar_lea.vmem %s1, %s254
      %p256 = pneg %p90
      %p257 = pneg %p87
      %p258 = pneg %p120
      %p259 = pneg %p117
      %s260 = smul.u32 %s21, 2
      %s261 = sadd.s32 %s260, %s22
      %p262 = scmp.lt.s32.totalorder %s261, 1
      %s263 = scalar_select %p262, %s261, 1
      %s264 = smul.addr %s263, 2
      %s265 = smul.addr %s264, 8
      %s266 = scalar_lea.vmem %s2, %s265
      %p267 = pneg %p150
      %p268 = pneg %p147
      %s269 = smul.u32 %s21, 2
      %s270 = sadd.s32 %s269, %s22
      %p271 = scmp.lt.s32.totalorder %s270, 1
      %s272 = scalar_select %p271, %s270, 1
      %s273 = smul.addr %s272, 2
      %s274 = smul.addr %s273, 8
      %s275 = scalar_lea.vmem %s3, %s274
      %p276 = pneg %p180
      %p277 = pneg %p177
      %s278 = smul.u32 %s21, 2
      %s279 = sadd.s32 %s278, %s22
      %p280 = scmp.lt.s32.totalorder %s279, 1
      %s281 = scalar_select %p280, %s279, 1
      %s282 = smul.addr %s281, 2
      %s283 = smul.addr %s282, 8
      %s284 = scalar_lea.vmem %s4, %s283
      %s285 = sadd.s32 %s21, %s23
      %s286 = smul.u32 2, %s285
      %p287 = scmp.lt.s32.totalorder %s22, 1
      %s288 = scalar_select %p287, %s22, 1
      %p289 = scmp.lt.s32.totalorder %s286, 1
      %s290 = scalar_select %p289, %s286, 1
      %s291 = smul.addr %s288, 4
      %s292 = sadd.s32 %s290, %s291
      %s293 = smul.addr %s292, 8
      %s294 = scalar_lea.vmem %s0, %s293
      %s295 = sadd.s32 %s21, %s23
      %s296 = smul.u32 2, %s295
      %s297 = sadd.s32 %s21, %s23
      %s298 = smul.u32 2, %s297
      %p299 = scmp.lt.s32.totalorder %s22, 1
      %s300 = scalar_select %p299, %s22, 1
      %p301 = scmp.lt.s32.totalorder %s298, 1
      %s302 = scalar_select %p301, %s298, 1
      %s303 = smul.addr %s300, 2
      %s304 = sadd.s32 %s302, %s303
      %s305 = scalar_lea.vmem %s1, %s304
      %s306 = sadd.s32 %s21, %s23
      %s307 = smul.u32 2, %s306
      %s308 = smul.u32 %s21, 2
      %s309 = sadd.s32 %s308, %s22
      %p310 = scmp.lt.s32.totalorder %s309, 1
      %s311 = scalar_select %p310, %s309, 1
      %s312 = smul.addr %s311, 2
      %s313 = smul.addr %s312, 8
      %s314 = scalar_lea.vmem %s2, %s313
      %s315 = smul.u32 %s21, 2
      %s316 = sadd.s32 %s315, %s22
      %s317 = smul.u32 %s21, 2
      %s318 = sadd.s32 %s317, %s22
      %p319 = scmp.lt.s32.totalorder %s318, 1
      %s320 = scalar_select %p319, %s318, 1
      %s321 = smul.addr %s320, 2
      %s322 = smul.addr %s321, 8
      %s323 = scalar_lea.vmem %s3, %s322
      %s324 = smul.u32 %s21, 2
      %s325 = sadd.s32 %s324, %s22
      %s326 = smul.u32 %s21, 2
      %s327 = sadd.s32 %s326, %s22
      %p328 = scmp.lt.s32.totalorder %s327, 1
      %s329 = scalar_select %p328, %s327, 1
      %s330 = smul.addr %s329, 2
      %s331 = smul.addr %s330, 8
      %s332 = scalar_lea.vmem %s4, %s331
      %s333 = smul.u32 %s21, 2
      %s334 = sadd.s32 %s333, %s22
      %p335 = scmp.eq.s32.totalorder %s23, 0
      // Predicated region
      $region29: #{tpu_custom_call.1} parent=27 // pred_check
        %p336 = pneg %p335
      $region30: #{tpu_custom_call.1} parent=27 // pred_check_branch
        %338 = sbr.rel (%p336) target = $region32
      $region31: #{tpu_custom_call.1} parent=27 // pred_region
        %vm339 = vcmask 7168
        %340 = vst.msk [vmem:[#allocation2] sm:$0xff] %vm339, 0.0
        %vm341 = vcmask 3072
        %342 = vst.msk [vmem:[#allocation2 + $0x8] sm:$0xf] %vm341, 0.0
        %343 = vst.msk [vmem:[#allocation3] sm:$0xff] %vm339, 0.0
        %344 = vst.msk [vmem:[#allocation3 + $0x8] sm:$0xf] %vm341, 0.0
        %345 = vst.msk [vmem:[#allocation4] sm:$0xff] %vm339, 0.0
        %346 = vst.msk [vmem:[#allocation4 + $0x8] sm:$0xf] %vm341, 0.0
      $region32: #{tpu_custom_call.1} parent=27 // pred_fallthru
        _
      %v347 = vld [vmem:[%s294] sm:$0xff]
      %v348 = vld [vmem:[%s294 + $0x8] sm:$0xff]
      %v349 = vld [vmem:[%s294 + $0x10] sm:$0xf]
      %v350 = vld [vmem:[%s294 + $0x18] sm:$0xf]
      %v351 = vld [vmem:[%s305] sm:$0x3]
      %vm352 = vcmask 1043456
      %v353 = vsel %vm352, %v349, -inf
      %v354 = vmax.f32 %v347, %v353
      %v355 = vrot.slane %v354, 4
      %v356 = vmax.f32 %v354, %v355
      %v357 = vrot.slane %v356, 2
      %v358 = vmax.f32 %v356, %v357
      %v359 = vrot.slane %v358, 1
      %v360 = vmax.f32 %v358, %v359
      %v361 = vsel %vm352, %v350, -inf
      %v362 = vmax.f32 %v348, %v361
      %v363 = vrot.slane %v362, 4
      %v364 = vmax.f32 %v362, %v363
      %v365 = vrot.slane %v364, 2
      %v366 = vmax.f32 %v364, %v365
      %v367 = vrot.slane %v366, 1
      %v368 = vmax.f32 %v366, %v367
      %v369 = vsub.f32 %v347, %v360
      %v370 = vsub.f32 %v348, %v368
      %v371 = vsub.f32 %v349, %v360
      %v372 = vsub.f32 %v350, %v368
      %v373 = vmul.f32 %v369, 1.442695
      %v374 = vpow.pop %v373
      %v375 = vmul.f32 %v370, 1.442695
      %v376 = vpow.pop %v375
      %v377 = vmul.f32 %v371, 1.442695
      %v378 = vpow.pop %v377
      %v379 = vmul.f32 %v372, 1.442695
      %v380 = vpow.pop %v379
      %v381 = vsel %vm352, %v378, 0.0
      %v382 = vadd.f32 %v374, %v381
      %v383 = vrot.slane %v382, 4
      %v384 = vadd.f32 %v382, %v383
      %v385 = vrot.slane %v384, 2
      %v386 = vadd.f32 %v384, %v385
      %v387 = vrot.slane %v386, 1
      %v388 = vadd.f32 %v386, %v387
      %v389 = vsel %vm352, %v380, 0.0
      %v390 = vadd.f32 %v376, %v389
      %v391 = vrot.slane %v390, 4
      %v392 = vadd.f32 %v390, %v391
      %v393 = vrot.slane %v392, 2
      %v394 = vadd.f32 %v392, %v393
      %v395 = vrot.slane %v394, 1
      %v396 = vadd.f32 %v394, %v395
      %v397 = vrcp.pop %v388
      %v398 = vrcp.pop %v396
      %v399 = vmul.f32 %v374, %v397
      %v400 = vmul.f32 %v376, %v398
      %v401 = vmul.f32 %v378, %v397
      %v402 = vmul.f32 %v380, %v398
      %v403 = vlaneseq
      %v404 = vshrl.u32 %v403, 7
      %v405 = vadd.s32 %v404, 8
      %v406 = vlaneseq
      %v407 = vshrl.u32 %v406, 7
      %v408 = vsub.s32 0, %v407
      %v409 = vrot.slane %v351, %v408
      %v410 = vlaneseq
      %v411 = vshrl.u32 %v410, 7
      %v412 = vsub.s32 1, %v411
      %v413 = vrot.slane %v351, %v412
      %vm414 = vcmp.eq.s32.totalorder %v409, %v404
      %vm415 = vcmp.eq.s32.totalorder %v413, %v404
      %vm416 = vcmp.eq.s32.totalorder %v409, %v405
      %vm417 = vcmp.eq.s32.totalorder %v413, %v405
      %v418 = vsel %vm414, %v399, 0.0
      %v419 = vsel %vm415, %v400, 0.0
      %v420 = vsel %vm416, %v401, 0.0
      %v421 = vsel %vm417, %v402, 0.0
      %v422 = vsel %vm414, 1.0, 0.0
      %v423 = vsel %vm415, 1.0, 0.0
      %v424 = vsel %vm416, 1.0, 0.0
      %v425 = vsel %vm417, 1.0, 0.0
      %v426 = vld [vmem:[#allocation2] sm:$0xff]
      %v427 = vld [vmem:[#allocation2 + $0x8] sm:$0xf]
      %v428 = vadd.f32 %v418, %v419
      %429 = vadd.xlane.f32.xlu0 %v428
      %v430 = vpop.xlane.xlu0 %429
      %v431 = vsel %vm352, %v420, 0.0
      %v432 = vsel %vm352, %v421, 0.0
      %v433 = vadd.f32 %v431, %v432
      %434 = vadd.xlane.f32.xlu0 %v433
      %v435 = vpop.xlane.xlu0 %434
      %v436 = vadd.f32 %v426, %v430
      %v437 = vadd.f32 %v427, %v435
      %vm438 = vcmask 7168
      %439 = vst.msk [vmem:[#allocation2] sm:$0xff] %vm438, %v436
      %vm440 = vcmask 3072
      %441 = vst.msk [vmem:[#allocation2 + $0x8] sm:$0xf] %vm440, %v437
      %v442 = vld [vmem:[#allocation3] sm:$0xff]
      %v443 = vld [vmem:[#allocation3 + $0x8] sm:$0xf]
      %v444 = vadd.f32 %v399, %v400
      %445 = vadd.xlane.f32.xlu0 %v444
      %v446 = vpop.xlane.xlu0 %445
      %v447 = vsel %vm352, %v401, 0.0
      %v448 = vsel %vm352, %v402, 0.0
      %v449 = vadd.f32 %v447, %v448
      %450 = vadd.xlane.f32.xlu0 %v449
      %v451 = vpop.xlane.xlu0 %450
      %v452 = vadd.f32 %v442, %v446
      %v453 = vadd.f32 %v443, %v451
      %454 = vst.msk [vmem:[#allocation3] sm:$0xff] %vm438, %v452
      %455 = vst.msk [vmem:[#allocation3 + $0x8] sm:$0xf] %vm440, %v453
      %v456 = vld [vmem:[#allocation4] sm:$0xff]
      %v457 = vld [vmem:[#allocation4 + $0x8] sm:$0xf]
      %v458 = vadd.f32 %v422, %v423
      %459 = vadd.xlane.f32.xlu0 %v458
      %v460 = vpop.xlane.xlu0 %459
      %v461 = vsel %vm352, %v424, 0.0
      %v462 = vsel %vm352, %v425, 0.0
      %v463 = vadd.f32 %v461, %v462
      %464 = vadd.xlane.f32.xlu0 %v463
      %v465 = vpop.xlane.xlu0 %464
      %v466 = vadd.f32 %v456, %v460
      %v467 = vadd.f32 %v457, %v465
      %468 = vst.msk [vmem:[#allocation4] sm:$0xff] %vm438, %v466
      %469 = vst.msk [vmem:[#allocation4 + $0x8] sm:$0xf] %vm440, %v467
      // Predicated region
      $region33: #{tpu_custom_call.1} parent=27 // pred_check
        %p470 = pneg %p335
      $region34: #{tpu_custom_call.1} parent=27 // pred_check_branch
        %472 = sbr.rel (%p470) target = $region36
      $region35: #{tpu_custom_call.1} parent=27 // pred_region
        %v473 = vld [vmem:[#allocation2] sm:$0xff]
        %v474 = vld [vmem:[#allocation2 + $0x8] sm:$0xf]
        %475 = vst.msk [vmem:[%s314] sm:$0xff] %vm438, %v473
        %476 = vst.msk [vmem:[%s314 + $0x8] sm:$0xf] %vm440, %v474
        %v477 = vld [vmem:[#allocation3] sm:$0xff]
        %v478 = vld [vmem:[#allocation3 + $0x8] sm:$0xf]
        %479 = vst.msk [vmem:[%s323] sm:$0xff] %vm438, %v477
        %480 = vst.msk [vmem:[%s323 + $0x8] sm:$0xf] %vm440, %v478
        %v481 = vld [vmem:[#allocation4] sm:$0xff]
        %v482 = vld [vmem:[#allocation4 + $0x8] sm:$0xf]
        %483 = vst.msk [vmem:[%s332] sm:$0xff] %vm438, %v481
        %484 = vst.msk [vmem:[%s332 + $0x8] sm:$0xf] %vm440, %v482
      $region36: #{tpu_custom_call.1} parent=27 // pred_fallthru
        _
      %s485 = smul.u32 %s21, 2
      %s486 = sadd.s32 %s485, %s22
      %p487 = scmp.lt.s32.totalorder %s486, 1
      %s488 = scalar_select %p487, %s486, 1
      %s489 = smul.addr %s488, 2
      %s490 = smul.addr %s489, 8
      %s491 = scalar_lea.vmem %s2, %s490
      %s492 = smul.u32 %s21, 2
      %s493 = sadd.s32 %s492, %s22
      %p494 = scmp.lt.s32.totalorder %s493, 1
      %s495 = scalar_select %p494, %s493, 1
      %s496 = smul.addr %s495, 2
      %s497 = smul.addr %s496, 8
      %s498 = scalar_lea.vmem %s3, %s497
      %s499 = smul.u32 %s21, 2
      %s500 = sadd.s32 %s499, %s22
      %p501 = scmp.lt.s32.totalorder %s500, 1
      %s502 = scalar_select %p501, %s500, 1
      %s503 = smul.addr %s502, 2
      %s504 = smul.addr %s503, 8
      %s505 = scalar_lea.vmem %s4, %s504
      // Predicated region
      $region37: #{tpu_custom_call.1} parent=27 // pred_check
        %p506 = pneg %p117
      $region38: #{tpu_custom_call.1} parent=27 // pred_check_branch
        %508 = sbr.rel (%p506) target = $region40
      $region39: #{tpu_custom_call.1} parent=27 // pred_region
        %s509 = smul.u32 %s21, 2
        %s510 = sadd.s32 %s509, %s22
      $region40: #{tpu_custom_call.1} parent=27 // pred_fallthru
        _
      // Predicated region
      $region41: #{tpu_custom_call.1} parent=27 // pred_check
        %p511 = pneg %p147
      $region42: #{tpu_custom_call.1} parent=27 // pred_check_branch
        %513 = sbr.rel (%p511) target = $region44
      $region43: #{tpu_custom_call.1} parent=27 // pred_region
        %s514 = smul.u32 %s21, 2
        %s515 = sadd.s32 %s514, %s22
      $region44: #{tpu_custom_call.1} parent=27 // pred_fallthru
        _
      // Predicated region
      $region45: #{tpu_custom_call.1} parent=27 // pred_check
        %p516 = pneg %p177
      $region46: #{tpu_custom_call.1} parent=27 // pred_check_branch
        %518 = sbr.rel (%p516) target = $region48
      $region47: #{tpu_custom_call.1} parent=27 // pred_region
        %s519 = smul.u32 %s21, 2
        %s520 = sadd.s32 %s519, %s22
      $region48: #{tpu_custom_call.1} parent=27 // pred_fallthru
        _
    $region28: #{tpu_custom_call.1} parent=5 // pred_fallthru
      _
    %p521 = scmp.le.s32.totalorder 2, %s11
    // Predicated region
    $region49: #{tpu_custom_call.1} parent=5 // pred_check
      %p522 = pneg %p521
    $region50: #{tpu_custom_call.1} parent=5 // pred_check_branch
      %524 = sbr.rel (%p522) target = $region52
    $region51: #{tpu_custom_call.1} parent=5 // pred_region
      %s525 = ssub.s32 %s11, 2
      // Predicated region
      $region53: #{tpu_custom_call.1} parent=51 // pred_check
        %p526 = pneg %p123
      $region54: #{tpu_custom_call.1} parent=51 // pred_check_branch
        %528 = sbr.rel (%p526) target = $region56
      $region55: #{tpu_custom_call.1} parent=51 // pred_region
        %s529 = smul.u32 %s24, 2
        %s530 = sadd.s32 %s529, %s25
        %p531 = scmp.lt.s32.totalorder %s530, 1
        %s532 = scalar_select %p531, %s530, 1
        %s533 = smul.addr %s532, 2
        %s534 = smul.addr %s533, 8
        %s535 = scalar_lea.vmem %s2, %s534
      $region56: #{tpu_custom_call.1} parent=51 // pred_fallthru
        _
      // Predicated region
      $region57: #{tpu_custom_call.1} parent=51 // pred_check
        %p536 = pneg %p153
      $region58: #{tpu_custom_call.1} parent=51 // pred_check_branch
        %538 = sbr.rel (%p536) target = $region60
      $region59: #{tpu_custom_call.1} parent=51 // pred_region
        %s539 = smul.u32 %s24, 2
        %s540 = sadd.s32 %s539, %s25
        %p541 = scmp.lt.s32.totalorder %s540, 1
        %s542 = scalar_select %p541, %s540, 1
        %s543 = smul.addr %s542, 2
        %s544 = smul.addr %s543, 8
        %s545 = scalar_lea.vmem %s3, %s544
      $region60: #{tpu_custom_call.1} parent=51 // pred_fallthru
        _
      // Predicated region
      $region61: #{tpu_custom_call.1} parent=51 // pred_check
        %p546 = pneg %p183
      $region62: #{tpu_custom_call.1} parent=51 // pred_check_branch
        %548 = sbr.rel (%p546) target = $region64
      $region63: #{tpu_custom_call.1} parent=51 // pred_region
        %s549 = smul.u32 %s24, 2
        %s550 = sadd.s32 %s549, %s25
        %p551 = scmp.lt.s32.totalorder %s550, 1
        %s552 = scalar_select %p551, %s550, 1
        %s553 = smul.addr %s552, 2
        %s554 = smul.addr %s553, 8
        %s555 = scalar_lea.vmem %s4, %s554
      $region64: #{tpu_custom_call.1} parent=51 // pred_fallthru
        _
    $region52: #{tpu_custom_call.1} parent=5 // pred_fallthru
      _
  $region6: #{tpu_custom_call.1} parent=0 // loop_footer
    %s15 = sadd.s32 1, %s11
  $region7: #{tpu_custom_call.1} parent=0 // loop_footer_branch
    %10 = sbr.rel target = $region3
  $region8: #{tpu_custom_call.1} parent=0 // loop_exit
    _

</llo_original>
